<compile_context>
chip_gen: v6e
topology: v6e:2x2x1
jax: 0.10.0
libtpu: 0.0.40
codegen_flags: <defaults>
</compile_context>

<pallas_src>
import jax
import jax.numpy as jnp
from jax.experimental import pallas as pl
from jax.experimental.pallas import tpu as pltpu


def _conv_block_kernel(x_ref, w_ref, b_ref, o_ref):
    """One batched row-slab matmul per grid step.

    x_ref: (B_blk*H, K*Wp*Cin)   concatenated shifted row slabs, bf16
    w_ref: (K*Wp*Cin, W*Cout)    block-Toeplitz weight (grid-resident), bf16
    b_ref: (1, W*Cout)           bias tiled along W, f32
    o_ref: (B_blk*H, W*Cout)     lane-dense output slab, f32
    """
    acc = jnp.dot(x_ref[...], w_ref[...], preferred_element_type=jnp.float32)
    acc = acc + b_ref[...]
    # LeakyReLU, default negative_slope = 0.01 (matches torch.nn.LeakyReLU()).
    o_ref[...] = jnp.where(acc >= 0.0, acc, 0.01 * acc)


def precompute_conv_block_params(weight, bias, W):
    """Build the block-Toeplitz weight + tiled bias ONCE per weight update.

    weight: (Cout, Cin, K, K) f32 (PyTorch Conv2d layout), bias: (Cout,) f32.
    Returns:
      wt_cat : (K*Wp*Cin, W*Cout) bf16   with  wt_cat[kh*Wp*Cin + u*Cin + ci,
               w*Cout + co] = weight[co, ci, kh, u-w] if 0 <= u-w < K else 0
      b_tiled: (1, W*Cout) f32
    """
    Cout, Cin, K, K2 = weight.shape
    assert K == K2
    Wp = W + K - 1
    w_hwio = jnp.transpose(weight, (2, 3, 1, 0))                      # (K, K, Cin, Cout)
    shift = jnp.stack([jnp.eye(Wp, W, k=-kw, dtype=weight.dtype)      # (K, Wp, W)
                       for kw in range(K)])
    wt = jnp.einsum("auw,haio->huiwo", shift, w_hwio)                 # (K, Wp, Cin, W, Cout)
    wt_cat = wt.reshape(K * Wp * Cin, W * Cout).astype(jnp.bfloat16)
    b_tiled = jnp.tile(bias, W).reshape(1, W * Cout).astype(jnp.float32)
    return wt_cat, b_tiled


def _pick_batch_block(N, H, target_m=128):
    """Images per grid step: aim at M ~ 128 MXU rows, keep >= 2 parallel steps
    when N >= 2 (so v7x's two TensorCores both get work)."""
    b = max(1, target_m // H)
    b = min(b, N)
    if N >= 2:
        b = min(b, (N + 1) // 2)
    if (b * H) % 8 != 0:          # (8,128) sublane rule: fall back to one full block
        b = N
    return b


def conv_block_forward(x_nchw, wt_cat, b_tiled):
    """ConvBlock forward (3x3 conv, stride 1, pad 1, LeakyReLU 0.01).

    x_nchw : (N, Cin, H, W) f32 (PyTorch NCHW)
    wt_cat : (K*Wp*Cin, W*Cout) bf16 from precompute_conv_block_params
    b_tiled: (1, W*Cout) f32 from precompute_conv_block_params
    returns: (N, Cout, H, W) f32
    """
    N, Cin, H, W = x_nchw.shape
    K = 3
    Hp, Wp = H + K - 1, W + K - 1
    KWC, WC = wt_cat.shape
    Cout = WC // W
    assert KWC == K * Wp * Cin and WC == W * Cout

    B_blk = _pick_batch_block(N, H)
    n_steps = -(-N // B_blk)
    N_pad = n_steps * B_blk

    # ---- input prep (plain JAX; fuses under the caller's jit) ---------------
    x_nhwc = jnp.transpose(x_nchw, (0, 2, 3, 1))                      # (N, H, W, Cin)
    x_pad = jnp.pad(x_nhwc, ((0, N_pad - N), (1, 1), (1, 1), (0, 0))) # (N_pad, Hp, Wp, Cin)
    x_rows = x_pad.reshape(N_pad, Hp, Wp * Cin)
    # Concatenate the K row shifts so the kernel does a single 216-deep dot.
    x_cat = jnp.concatenate([x_rows[:, kh:kh + H, :] for kh in range(K)], axis=-1)
    x_cat = x_cat.reshape(N_pad * H, KWC).astype(jnp.bfloat16)

    # ---- cost estimate: real conv MACs only, resident weight counted once ---
    flops = 2 * N * H * W * Cout * K * K * Cin
    bytes_accessed = int(x_cat.size * 2 + wt_cat.size * 2
                         + b_tiled.size * 4 + N_pad * H * WC * 4)

    out_rows = pl.pallas_call(
        _conv_block_kernel,
        out_shape=jax.ShapeDtypeStruct((N_pad * H, WC), jnp.float32),
        grid=(n_steps,),
        in_specs=[
            pl.BlockSpec((B_blk * H, KWC), lambda n: (n, 0)),   # batched row slabs
            pl.BlockSpec((KWC, WC), lambda n: (0, 0)),          # resident Toeplitz weight
            pl.BlockSpec((1, WC), lambda n: (0, 0)),            # tiled bias
        ],
        out_specs=pl.BlockSpec((B_blk * H, WC), lambda n: (n, 0)),
        compiler_params=pltpu.CompilerParams(
            dimension_semantics=("parallel",)),
        cost_estimate=pl.CostEstimate(flops=flops, transcendentals=0,
                                      bytes_accessed=bytes_accessed),
    )(x_cat, wt_cat, b_tiled)

    out_nhwc = out_rows[:N * H].reshape(N, H, W, Cout)
    return jnp.transpose(out_nhwc, (0, 3, 1, 2)).astype(x_nchw.dtype)  # back to NCHW


def _reference(x_nchw, weight, bias, matmul_dtype=jnp.float32):
    """Pure-JAX reference (lax conv) for correctness check."""
    out = jax.lax.conv_general_dilated(
        x_nchw.astype(matmul_dtype), weight.astype(matmul_dtype),
        window_strides=(1, 1), padding=((1, 1), (1, 1)),
        dimension_numbers=("NCHW", "OIHW", "NCHW"),
        preferred_element_type=jnp.float32)
    out = out + bias.reshape(1, -1, 1, 1)
    return jnp.where(out >= 0.0, out, 0.01 * out)


if __name__ == "__main__":
    key = jax.random.PRNGKey(0)
    k_x, k_w, k_b = jax.random.split(key, 3)

    N, Cin, H, W = 2, 4, 16, 16
    Cout, K = 8, 3

    x = jax.random.normal(k_x, (N, Cin, H, W), dtype=jnp.float32)
    weight = 0.1 * jax.random.normal(k_w, (Cout, Cin, K, K), dtype=jnp.float32)
    bias = 0.1 * jax.random.normal(k_b, (Cout,), dtype=jnp.float32)

    # Toeplitz weight / bias built once (out of the hot path), forward jitted.
    wt_cat, b_tiled = precompute_conv_block_params(weight, bias, W)
    fwd = jax.jit(conv_block_forward)

    out = jax.block_until_ready(fwd(x, wt_cat, b_tiled))
    assert out.shape == (N, Cout, H, W)

    # Tight check vs a reference that also feeds bf16 operands to the MXU.
    ref_bf16 = jax.block_until_ready(_reference(x, weight, bias, jnp.bfloat16))
    assert jnp.allclose(out, ref_bf16, atol=1e-3, rtol=1e-3)

    # Looser check vs the full-f32 reference (bounds the bf16 quantization).
    ref_f32 = jax.block_until_ready(_reference(x, weight, bias, jnp.float32))
    assert jnp.allclose(out, ref_f32, atol=3e-2, rtol=3e-2)

    print("KERNEL_OK")
</pallas_src>

<mosaic_0001>
module attributes {stable_mosaic.version = 11 : i64} {
  func.func @_conv_block_kernel(%arg0: i32, %arg1: memref<16x216xbf16, #tpu.memory_space<vmem>>, %arg2: memref<216x128xbf16, #tpu.memory_space<vmem>>, %arg3: memref<1x128xf32, #tpu.memory_space<vmem>>, %arg4: memref<16x128xf32, #tpu.memory_space<vmem>>) attributes {dimension_semantics = [#tpu.dimension_semantics<parallel>], iteration_bounds = array<i64: 2>, scalar_prefetch = 0 : i64, scratch_operands = 0 : i64, tpu.core_type = #tpu.core_type<tc>, window_params = [{transform_indices = @transform_0, window_bounds = array<i64: 16, 216>}, {pipeline_mode = #tpu.pipeline_mode<synchronous>, transform_indices = @transform_1, window_bounds = array<i64: 216, 128>}, {pipeline_mode = #tpu.pipeline_mode<synchronous>, transform_indices = @transform_2, window_bounds = array<i64: 1, 128>}, {transform_indices = @transform_3, window_bounds = array<i64: 16, 128>}]} {
    %c0 = arith.constant 0 : index
    %c0_0 = arith.constant 0 : index
    %0 = vector.load %arg1[%c0, %c0_0] : memref<16x216xbf16, #tpu.memory_space<vmem>>, vector<16x216xbf16>
    %c0_1 = arith.constant 0 : index
    %c0_2 = arith.constant 0 : index
    %1 = vector.load %arg2[%c0_1, %c0_2] : memref<216x128xbf16, #tpu.memory_space<vmem>>, vector<216x128xbf16>
    %cst = arith.constant dense<0.000000e+00> : vector<16x128xf32>
    %2 = tpu.matmul %0, %1, %cst {dimension_numbers = #tpu.dot_dimension_numbers<[1], [0], [0], [1], [0, 0, 1, 1], [], []>} : vector<16x216xbf16>, vector<216x128xbf16>, vector<16x128xf32> -> vector<16x128xf32>
    %c0_3 = arith.constant 0 : index
    %c0_4 = arith.constant 0 : index
    %3 = vector.load %arg3[%c0_3, %c0_4] : memref<1x128xf32, #tpu.memory_space<vmem>>, vector<1x128xf32>
    %4 = vector.broadcast %3 : vector<1x128xf32> to vector<16x128xf32>
    %5 = arith.addf %2, %4 : vector<16x128xf32>
    %cst_5 = arith.constant 0.000000e+00 : f32
    %6 = vector.broadcast %cst_5 : f32 to vector<16x128xf32>
    %7 = arith.cmpf oge, %5, %6 : vector<16x128xf32>
    %cst_6 = arith.constant 0.00999999977 : f32
    %8 = vector.broadcast %cst_6 : f32 to vector<16x128xf32>
    %9 = arith.mulf %8, %5 : vector<16x128xf32>
    %10 = arith.select %7, %5, %9 : vector<16x128xi1>, vector<16x128xf32>
    %c0_7 = arith.constant 0 : index
    %c0_8 = arith.constant 0 : index
    %11 = vector.load %arg4[%c0_7, %c0_8] : memref<16x128xf32, #tpu.memory_space<vmem>>, vector<16x128xf32>
    tpu.vector_store %arg4[%c0_7, %c0_8], %10 {strides = array<i32>} : memref<16x128xf32, #tpu.memory_space<vmem>>, vector<16x128xf32>,
    return
  }
  func.func @transform_0(%arg0: i32) -> (i32, i32) {
    %c0_i32 = arith.constant 0 : i32
    %c0_i32_0 = arith.constant 0 : i32
    return %arg0, %c0_i32 : i32, i32
  }
  func.func @transform_1(%arg0: i32) -> (i32, i32) {
    %c0_i32 = arith.constant 0 : i32
    %c0_i32_0 = arith.constant 0 : i32
    %c0_i32_1 = arith.constant 0 : i32
    return %c0_i32, %c0_i32_0 : i32, i32
  }
  func.func @transform_2(%arg0: i32) -> (i32, i32) {
    %c0_i32 = arith.constant 0 : i32
    %c0_i32_0 = arith.constant 0 : i32
    %c0_i32_1 = arith.constant 0 : i32
    return %c0_i32, %c0_i32_0 : i32, i32
  }
  func.func @transform_3(%arg0: i32) -> (i32, i32) {
    %c0_i32 = arith.constant 0 : i32
    %c0_i32_0 = arith.constant 0 : i32
    return %arg0, %c0_i32 : i32, i32
  }
}

</mosaic_0001>

<llo_original>
// kernel: conv_block_forward.1
$region0: #{conv_block_forward.1}
  #allocation0 [shape = 'u32[]', space=smem, size = 0x4, offset = 0x4, fixed_abs, tag = 'smem constant byte address 0x4 - core index']
  #allocation1 [shape = 'u32[144,128]{1,0:T(1,128)}', space=vmem, size = 0x12000, scoped, tag = 'internal scratch']
  %s0 = inlined_call_operand.vmem [shape: bf16[32,216], index: 0, kind: input, shape index: {}]
  %s1 = inlined_call_operand.vmem [shape: bf16[216,128], index: 1, kind: input, shape index: {}]
  %s2 = inlined_call_operand.vmem [shape: f32[1,128], index: 2, kind: input, shape index: {}]
  %s3 = inlined_call_operand.vmem [shape: f32[32,128], index: 3, kind: output, shape index: {}]
  %s4 = sld [smem:[#allocation0]]
  $region45: #{conv_block_forward.1} parent=0
    _
  %s6 = ssub.s32 1, %s4
  %s7 = scalar_select 0, %s6, %s4
  loop: start=0, step=1, limit=4
  $region2: #{conv_block_forward.1} parent=0 // loop_pre_header
    _
  $region3: #{conv_block_forward.1} parent=0 // loop_header
    %s9 = sphi 0, %s13
    %p10 = scmp.ge.s32.totalorder %s9, 4
    %s19 = sphi 0, %s21
    %s22 = sphi 0, %s19
    %s23 = sphi 0, %s22
    %s39 = sphi 0, %s23
    %s43 = sphi 0, %s43
    %s45 = sphi 0, %s43
    %s46 = sphi 0, %s45
    %s60 = sphi 0, %s46
    %s64 = sphi 0, %s64
    %s66 = sphi 0, %s64
    %s67 = sphi 0, %s66
    %s81 = sphi 0, %s67
    %s87 = sphi 0, %s89
    %s90 = sphi 0, %s87
    %s91 = sphi 0, %s90
    %s107 = sphi 0, %s91
  $region4: #{conv_block_forward.1} parent=0 // loop_header_branch
    %12 = sbr.rel (%p10) target = $region8
  $region5: #{conv_block_forward.1} parent=0 // loop_body
    %s14 = ssub.s32 %s9, 1
    %s15 = ssub.s32 %s9, 2
    %s16 = sadd.s32 %s9, 1
    %s17 = ssub.s32 %s9, %s16
    %p18 = scmp.eq.s32.totalorder %s17, 0
    %s20 = sadd.s32 %s19, 1
    %s21 = scalar_select %p18, %s19, %s20
    %p24 = pneg %p18
    %p25 = scmp.eq.s32.totalorder %s9, 1
    %p26 = por %p24, %p25
    %p27 = scmp.ne.s32.totalorder %s19, %s22
    %p28 = scmp.eq.s32.totalorder %s9, 0
    %p29 = por %p27, %p28
    %p30 = scmp.ne.s32.totalorder %s19, %s22
    %p31 = scmp.eq.s32.totalorder %s14, 1
    %p32 = por %p30, %p31
    %p33 = scmp.ne.s32.totalorder %s22, %s23
    %p34 = scmp.eq.s32.totalorder %s14, 0
    %p35 = por %p33, %p34
    %p36 = scmp.ne.s32.totalorder %s22, %s23
    %p37 = scmp.eq.s32.totalorder %s15, 1
    %p38 = por %p36, %p37
    %p40 = scmp.ne.s32.totalorder %s23, %s39
    %p41 = scmp.eq.s32.totalorder %s15, 0
    %p42 = por %p40, %p41
    %s44 = sadd.s32 %s43, 1
    %p47 = scmp.eq.s32.totalorder %s9, 1
    %p48 = scmp.ne.s32.totalorder %s43, %s45
    %p49 = scmp.eq.s32.totalorder %s9, 0
    %p50 = por %p48, %p49
    %p51 = scmp.ne.s32.totalorder %s43, %s45
    %p52 = scmp.eq.s32.totalorder %s14, 1
    %p53 = por %p51, %p52
    %p54 = scmp.ne.s32.totalorder %s45, %s46
    %p55 = scmp.eq.s32.totalorder %s14, 0
    %p56 = por %p54, %p55
    %p57 = scmp.ne.s32.totalorder %s45, %s46
    %p58 = scmp.eq.s32.totalorder %s15, 1
    %p59 = por %p57, %p58
    %p61 = scmp.ne.s32.totalorder %s46, %s60
    %p62 = scmp.eq.s32.totalorder %s15, 0
    %p63 = por %p61, %p62
    %s65 = sadd.s32 %s64, 1
    %p68 = scmp.eq.s32.totalorder %s9, 1
    %p69 = scmp.ne.s32.totalorder %s64, %s66
    %p70 = scmp.eq.s32.totalorder %s9, 0
    %p71 = por %p69, %p70
    %p72 = scmp.ne.s32.totalorder %s64, %s66
    %p73 = scmp.eq.s32.totalorder %s14, 1
    %p74 = por %p72, %p73
    %p75 = scmp.ne.s32.totalorder %s66, %s67
    %p76 = scmp.eq.s32.totalorder %s14, 0
    %p77 = por %p75, %p76
    %p78 = scmp.ne.s32.totalorder %s66, %s67
    %p79 = scmp.eq.s32.totalorder %s15, 1
    %p80 = por %p78, %p79
    %p82 = scmp.ne.s32.totalorder %s67, %s81
    %p83 = scmp.eq.s32.totalorder %s15, 0
    %p84 = por %p82, %p83
    %s85 = ssub.s32 %s9, %s16
    %p86 = scmp.eq.s32.totalorder %s85, 0
    %s88 = sadd.s32 %s87, 1
    %s89 = scalar_select %p86, %s87, %s88
    %p92 = pneg %p86
    %p93 = scmp.eq.s32.totalorder %s9, 1
    %p94 = por %p92, %p93
    %p95 = scmp.ne.s32.totalorder %s87, %s90
    %p96 = scmp.eq.s32.totalorder %s9, 0
    %p97 = por %p95, %p96
    %p98 = scmp.ne.s32.totalorder %s87, %s90
    %p99 = scmp.eq.s32.totalorder %s14, 1
    %p100 = por %p98, %p99
    %p101 = scmp.ne.s32.totalorder %s90, %s91
    %p102 = scmp.eq.s32.totalorder %s14, 0
    %p103 = por %p101, %p102
    %p104 = scmp.ne.s32.totalorder %s90, %s91
    %p105 = scmp.eq.s32.totalorder %s15, 1
    %p106 = por %p104, %p105
    %p108 = scmp.ne.s32.totalorder %s91, %s107
    %p109 = scmp.eq.s32.totalorder %s15, 0
    %p110 = por %p108, %p109
    %p111 = scmp.le.s32.totalorder 1, %s9
    %p112 = scmp.lt.s32.totalorder %s9, 3
    %p113 = pnand %p111, %p112
    %p114 = pneg %p113
    // Predicated region
    $region9: #{conv_block_forward.1} parent=5 // pred_check
      _
    $region10: #{conv_block_forward.1} parent=5 // pred_check_branch
      %116 = sbr.rel (%p113) target = $region12
    $region11: #{conv_block_forward.1} parent=5 // pred_region
      %s117 = ssub.s32 %s9, 1
      // Predicated region
      $region13: #{conv_block_forward.1} parent=11 // pred_check
        %p118 = pneg %p56
      $region14: #{conv_block_forward.1} parent=11 // pred_check_branch
        %120 = sbr.rel (%p118) target = $region16
      $region15: #{conv_block_forward.1} parent=11 // pred_region
        _
      $region16: #{conv_block_forward.1} parent=11 // pred_fallthru
        _
      // Predicated region
      $region17: #{conv_block_forward.1} parent=11 // pred_check
        %p121 = pneg %p77
      $region18: #{conv_block_forward.1} parent=11 // pred_check_branch
        %123 = sbr.rel (%p121) target = $region20
      $region19: #{conv_block_forward.1} parent=11 // pred_region
        _
      $region20: #{conv_block_forward.1} parent=11 // pred_fallthru
        _
    $region12: #{conv_block_forward.1} parent=5 // pred_fallthru
      _
    %p124 = scmp.lt.s32.totalorder %s9, 2
    // Predicated region
    $region21: #{conv_block_forward.1} parent=5 // pred_check
      %p125 = pneg %p124
    $region22: #{conv_block_forward.1} parent=5 // pred_check_branch
      %127 = sbr.rel (%p125) target = $region24
    $region23: #{conv_block_forward.1} parent=5 // pred_region
      // Predicated region
      $region25: #{conv_block_forward.1} parent=23 // pred_check
        %p128 = pneg %p29
      $region26: #{conv_block_forward.1} parent=23 // pred_check_branch
        %130 = sbr.rel (%p128) target = $region28
      $region27: #{conv_block_forward.1} parent=23 // pred_region
        %s131 = smul.u32 2, %s9
        %p132 = scmp.lt.s32.totalorder %s131, 3
        %s133 = scalar_select %p132, %s131, 3
        %s134 = smul.addr %s133, 2
        %s135 = smul.addr %s134, 4
        %s136 = scalar_lea.vmem %s0, %s135
        %s137 = smul.u32 2, %s9
      $region28: #{conv_block_forward.1} parent=23 // pred_fallthru
        _
    $region24: #{conv_block_forward.1} parent=5 // pred_fallthru
      _
    %p138 = scmp.le.s32.totalorder 1, %s9
    %p139 = scmp.lt.s32.totalorder %s9, 3
    %p140 = pnand %p138, %p139
    %p141 = pneg %p140
    // Predicated region
    $region29: #{conv_block_forward.1} parent=5 // pred_check
      _
    $region30: #{conv_block_forward.1} parent=5 // pred_check_branch
      %143 = sbr.rel (%p140) target = $region32
    $region31: #{conv_block_forward.1} parent=5 // pred_region
      %s144 = ssub.s32 %s9, 1
      %s145 = smul.u32 2, %s14
      %p146 = scmp.lt.s32.totalorder %s145, 3
      %s147 = scalar_select %p146, %s145, 3
      %s148 = smul.addr %s147, 2
      %s149 = smul.addr %s148, 4
      %s150 = scalar_lea.vmem %s0, %s149
      %p151 = pneg %p35
      %p152 = pneg %p32
      %p153 = pneg %p56
      %p154 = pneg %p53
      %p155 = pneg %p77
      %p156 = pneg %p74
      %p157 = pneg %p103
      %p158 = pneg %p100
      %s159 = smul.u32 2, %s14
      %p160 = scmp.lt.s32.totalorder %s159, 3
      %s161 = scalar_select %p160, %s159, 3
      %s162 = smul.addr %s161, 8
      %s163 = scalar_lea.vmem %s3, %s162
      %s164 = smul.u32 2, %s14
      %p165 = scmp.lt.s32.totalorder %s164, 3
      %s166 = scalar_select %p165, %s164, 3
      %s167 = smul.addr %s166, 2
      %s168 = smul.addr %s167, 4
      %s169 = scalar_lea.vmem %s0, %s168
      %s170 = smul.u32 2, %s14
      %s171 = smul.u32 2, %s14
      %p172 = scmp.lt.s32.totalorder %s171, 3
      %s173 = scalar_select %p172, %s171, 3
      %s174 = smul.addr %s173, 8
      %s175 = scalar_lea.vmem %s3, %s174
      %s176 = smul.u32 2, %s14
      %v178 = vld [vmem:[%s169] sm:$0xff]
      %v179 = vld [vmem:[%s169 + $0x8] sm:$0xff]
      %v180 = vld [vmem:[%s1] sm:$0xf]
      %v181 = vld [vmem:[%s1 + $0x4] sm:$0xf]
      %v182 = vld [vmem:[%s1 + $0x8] sm:$0xf]
      %v183 = vld [vmem:[%s1 + $0xc] sm:$0xf]
      %v184 = vld [vmem:[%s1 + $0x10] sm:$0xf]
      %v185 = vld [vmem:[%s1 + $0x14] sm:$0xf]
      %v186 = vld [vmem:[%s1 + $0x18] sm:$0xf]
      %v187 = vld [vmem:[%s1 + $0x1c] sm:$0xf]
      %v188 = vld [vmem:[%s1 + $0x20] sm:$0xf]
      %v189 = vld [vmem:[%s1 + $0x24] sm:$0xf]
      %v190 = vld [vmem:[%s1 + $0x28] sm:$0xf]
      %v191 = vld [vmem:[%s1 + $0x2c] sm:$0xf]
      %v192 = vld [vmem:[%s1 + $0x30] sm:$0xf]
      %v193 = vld [vmem:[%s1 + $0x34] sm:$0xf]
      %v194 = vld [vmem:[%s1 + $0x38] sm:$0xf]
      %v195 = vld [vmem:[%s1 + $0x3c] sm:$0xf]
      %v196 = vld [vmem:[%s1 + $0x40] sm:$0xf]
      %v197 = vld [vmem:[%s1 + $0x44] sm:$0xf]
      %v198 = vld [vmem:[%s1 + $0x48] sm:$0xf]
      %v199 = vld [vmem:[%s1 + $0x4c] sm:$0xf]
      %v200 = vld [vmem:[%s1 + $0x50] sm:$0xf]
      %v201 = vld [vmem:[%s1 + $0x54] sm:$0xf]
      %v202 = vld [vmem:[%s1 + $0x58] sm:$0xf]
      %v203 = vld [vmem:[%s1 + $0x5c] sm:$0xf]
      %v204 = vld [vmem:[%s1 + $0x60] sm:$0xf]
      %v205 = vld [vmem:[%s1 + $0x64] sm:$0xf]
      %v206 = vld [vmem:[%s1 + $0x68] sm:$0xf]
      %v207 = vld [vmem:[%s2] sm:$0x1]
      %v209 = vlaneseq
      %v210 = vshrl.u32 %v209, 7
      %v211 = vsub.s32 0, %v210
      %v212 = vrot.slane %v207, %v211
      %v216 = vunpack.c.l.b16 %v178
      %v217 = vunpack.c.h.b16 %v178
      %v218 = vunpack.c.l.b16 %v179
      %v219 = vunpack.c.h.b16 %v179
      %v220 = vpack.c.b16 %v218, %v216
      %v221 = vpack.c.b16 %v219, %v217
      %v250 = vunpack.c.l.b16 %v180
      %v251 = vunpack.c.l.b16 %v181
      %v252 = vunpack.c.l.b16 %v182
      %v253 = vunpack.c.l.b16 %v183
      %v254 = vunpack.c.l.b16 %v184
      %v255 = vunpack.c.l.b16 %v185
      %v256 = vunpack.c.l.b16 %v186
      %v257 = vunpack.c.l.b16 %v187
      %v258 = vunpack.c.l.b16 %v188
      %v259 = vunpack.c.l.b16 %v189
      %v260 = vunpack.c.l.b16 %v190
      %v261 = vunpack.c.l.b16 %v191
      %v262 = vunpack.c.l.b16 %v192
      %v263 = vunpack.c.l.b16 %v193
      %v264 = vunpack.c.l.b16 %v194
      %v265 = vunpack.c.l.b16 %v195
      %v266 = vunpack.c.l.b16 %v196
      %v267 = vunpack.c.l.b16 %v197
      %v268 = vunpack.c.l.b16 %v198
      %v269 = vunpack.c.l.b16 %v199
      %v270 = vunpack.c.l.b16 %v200
      %v271 = vunpack.c.l.b16 %v201
      %v272 = vunpack.c.l.b16 %v202
      %v273 = vunpack.c.l.b16 %v203
      %v274 = vunpack.c.l.b16 %v204
      %v275 = vunpack.c.l.b16 %v205
      %v276 = vunpack.c.l.b16 %v206
      %v277 = vpack.c.b16 %v251, %v250
      %v278 = vpack.c.b16 %v253, %v252
      %v279 = vpack.c.b16 %v255, %v254
      %v280 = vpack.c.b16 %v257, %v256
      %v281 = vpack.c.b16 %v259, %v258
      %v282 = vpack.c.b16 %v261, %v260
      %v283 = vpack.c.b16 %v263, %v262
      %v284 = vpack.c.b16 %v265, %v264
      %v285 = vpack.c.b16 %v267, %v266
      %v286 = vpack.c.b16 %v269, %v268
      %v287 = vpack.c.b16 %v271, %v270
      %v288 = vpack.c.b16 %v273, %v272
      %v289 = vpack.c.b16 %v275, %v274
      %v290 = vpack.c.b16 %v276, %v276
      %vm304 = vcmask 719872
      %v306 = vsel %vm304, %v221, 0
      %vm308 = vcmask 1043456
      %v310 = vsel %vm308, %v290, 0
      %312 = vmatprep.subr.bf16.mxu0 0
      %313 = vmatpush1.bf16.msra.mxu0 %v284
      %314 = vmatprep.subr.bf16.mxu0 0
      %315 = vmatpush1.bf16.msra.mxu0 %v283
      %316 = vmatprep.subr.bf16.mxu0 0
      %317 = vmatpush1.bf16.msra.mxu0 %v282
      %318 = vmatprep.subr.bf16.mxu0 0
      %319 = vmatpush1.bf16.msra.mxu0 %v281
      %320 = vmatprep.subr.bf16.mxu0 0
      %321 = vmatpush1.bf16.msra.mxu0 %v280
      %322 = vmatprep.subr.bf16.mxu0 0
      %323 = vmatpush1.bf16.msra.mxu0 %v279
      %324 = vmatprep.subr.bf16.mxu0 0
      %325 = vmatpush1.bf16.msra.mxu0 %v278
      %326 = vmatprep.subr.bf16.mxu0 0
      %327 = vmatpush1.bf16.msra.mxu0 %v277
      %328 = vmatprep.subr.bf16.mxu0 0
      %329 = vmatpush2.bf16.msra.mxu0 0
      %330 = vmatprep.subr.bf16.mxu0 0
      %331 = vmatpush2.bf16.msra.mxu0 0
      %332 = vmatprep.subr.bf16.mxu0 0
      %333 = vmatpush2.bf16.msra.mxu0 %v310
      %334 = vmatprep.subr.bf16.mxu0 0
      %335 = vmatpush2.bf16.msra.mxu0 %v289
      %336 = vmatprep.subr.bf16.mxu0 0
      %337 = vmatpush2.bf16.msra.mxu0 %v288
      %338 = vmatprep.subr.bf16.mxu0 0
      %339 = vmatpush2.bf16.msra.mxu0 %v287
      %340 = vmatprep.subr.bf16.mxu0 0
      %341 = vmatpush2.bf16.msra.mxu0 %v286
      %342 = vmatprep.subr.bf16.mxu0 0
      %343 = vmatpush2.bf16.msra.mxu0 %v285
      %344 = vmatprep.mubr.bf16.mxu0 %v306
      %345 = vmatmul.mubr.bf16.gmra.mxu0 %v220
      %v346 = vpop.f32.mrf.mxu0
      %v347 = vadd.f32 %v212, %v346
      %v348 = vpop.f32.mrf.mxu0
      %v349 = vpop.f32.mrf.mxu0
      %v350 = vadd.f32 %v212, %v349
      %v351 = vpop.f32.mrf.mxu0
      %352 = vdwg.mxu0
      %vm353 = vcmp.ge.f32.partialorder %v347, 0.0
      %vm354 = vcmp.ge.f32.partialorder %v350, 0.0
      %v355 = vmul.f32 %v347, 0.01
      %v356 = vmul.f32 %v350, 0.01
      %v357 = vsel %vm353, %v347, %v355
      %v358 = vsel %vm354, %v350, %v356
      %359 = vst [vmem:[%s175] sm:$0xff] %v357
      %360 = vst [vmem:[%s175 + $0x8] sm:$0xff] %v358
      %s361 = smul.u32 2, %s14
      %p362 = scmp.lt.s32.totalorder %s361, 3
      %s363 = scalar_select %p362, %s361, 3
      %s364 = smul.addr %s363, 8
      %s365 = scalar_lea.vmem %s3, %s364
      // Predicated region
      $region33: #{conv_block_forward.1} parent=31 // pred_check
        %p366 = pneg %p100
      $region34: #{conv_block_forward.1} parent=31 // pred_check_branch
        %368 = sbr.rel (%p366) target = $region36
      $region35: #{conv_block_forward.1} parent=31 // pred_region
        %s369 = smul.u32 2, %s14
      $region36: #{conv_block_forward.1} parent=31 // pred_fallthru
        _
    $region32: #{conv_block_forward.1} parent=5 // pred_fallthru
      _
    %p370 = scmp.le.s32.totalorder 2, %s9
    // Predicated region
    $region37: #{conv_block_forward.1} parent=5 // pred_check
      %p371 = pneg %p370
    $region38: #{conv_block_forward.1} parent=5 // pred_check_branch
      %373 = sbr.rel (%p371) target = $region40
    $region39: #{conv_block_forward.1} parent=5 // pred_region
      %s374 = ssub.s32 %s9, 2
      // Predicated region
      $region41: #{conv_block_forward.1} parent=39 // pred_check
        %p375 = pneg %p106
      $region42: #{conv_block_forward.1} parent=39 // pred_check_branch
        %377 = sbr.rel (%p375) target = $region44
      $region43: #{conv_block_forward.1} parent=39 // pred_region
        %s378 = smul.u32 2, %s15
        %p379 = scmp.lt.s32.totalorder %s378, 3
        %s380 = scalar_select %p379, %s378, 3
        %s381 = smul.addr %s380, 8
        %s382 = scalar_lea.vmem %s3, %s381
      $region44: #{conv_block_forward.1} parent=39 // pred_fallthru
        _
    $region40: #{conv_block_forward.1} parent=5 // pred_fallthru
      _
  $region6: #{conv_block_forward.1} parent=0 // loop_footer
    %s13 = sadd.s32 1, %s9
  $region7: #{conv_block_forward.1} parent=0 // loop_footer_branch
    %8 = sbr.rel target = $region3
  $region8: #{conv_block_forward.1} parent=0 // loop_exit
    _

</llo_original>
